<compile_context>
chip_gen: v5e
topology: v5e:2x2
jax: 0.10.0
libtpu: 0.0.40
codegen_flags: <defaults>
</compile_context>

<pallas_src>
import functools

import jax
import jax.numpy as jnp
from jax import lax
from jax.experimental import pallas as pl
from jax.experimental.pallas import tpu as pltpu

C_FEAT = 128                    # gram_matrix hard-codes features.view(128, -1)
_BLOCK_BYTES = 4 * 1024 * 1024  # ~4 MiB x-block: ~85%+ of HBM roofline, VMEM-safe
_NUM_SHARDS = 2                 # leading "parallel" grid axis (uses both v7x TCs)
_VMEM_LIMIT = 48 * 1024 * 1024  # explicit scoped-VMEM limit, safe on v5e/v6e/v7x
_BF16_CIN_THRESHOLD = 256       # cast X X^T operands to bf16 only when MXU-bound


def _round_up(v, m):
    return ((v + m - 1) // m) * m


def _pick_tile(hw, c_in, elem_bytes, num_shards):
    """Spatial tile in lanes, sized by bytes and clamped to what hw needs."""
    ts = (_BLOCK_BYTES // (elem_bytes * c_in)) // 128 * 128
    ts = max(128, ts)
    per_shard = _round_up(-(-hw // num_shards), 128)   # ceil(hw/num_shards) -> x128
    return min(ts, per_shard)


def _stats_kernel(x_ref, s_mat_ref, s_vec_ref, *, cast_bf16):
    """Accumulate S += X X^T and s += X 1 for this shard's spatial stream."""
    i = pl.program_id(1)                 # inner "arbitrary" (reduction) axis

    @pl.when(i == 0)
    def _init():
        s_mat_ref[...] = jnp.zeros_like(s_mat_ref)
        s_vec_ref[...] = jnp.zeros_like(s_vec_ref)

    x_blk = x_ref[...]                                        # (c_in, ts) f32
    x_mm = x_blk.astype(jnp.bfloat16) if cast_bf16 else x_blk
    s_mat_ref[...] += lax.dot_general(
        x_mm, x_mm, (((1,), (1,)), ((), ())),
        preferred_element_type=jnp.float32)                   # (c_in, c_in)
    s_vec_ref[...] += jnp.sum(x_blk, axis=1, keepdims=True)   # (c_in, 1)


def style_loss(x_flat, w, b, tgt_gram, normalize, *, num_shards=_NUM_SHARDS):
    """x_flat: (C_in, H*W) f32; w: (128, C_in); b: (128, 1); tgt_gram: (128, 128)."""
    c_in, hw = x_flat.shape
    elem_bytes = jnp.dtype(x_flat.dtype).itemsize

    ts = _pick_tile(hw, c_in, elem_bytes, num_shards)
    n_inner = -(-hw // (ts * num_shards))
    hw_pad = ts * num_shards * n_inner
    if hw_pad != hw:
        # Zero columns contribute nothing to S = X X^T or s = X 1 -> exact.
        x_flat = jnp.pad(x_flat, ((0, 0), (0, hw_pad - hw)))

    cast_bf16 = (x_flat.dtype == jnp.float32) and (c_in >= _BF16_CIN_THRESHOLD)
    kern = functools.partial(_stats_kernel, cast_bf16=cast_bf16)

    s_parts, v_parts = pl.pallas_call(
        kern,
        out_shape=(
            jax.ShapeDtypeStruct((num_shards, c_in, c_in), jnp.float32),
            jax.ShapeDtypeStruct((num_shards, c_in, 1), jnp.float32),
        ),
        grid=(num_shards, n_inner),
        in_specs=[
            # x streamed: each shard c walks its own contiguous spatial range.
            pl.BlockSpec((c_in, ts), lambda c, i: (0, c * n_inner + i)),
        ],
        out_specs=(
            # Per-shard partial statistics, resident across the inner axis.
            pl.BlockSpec((None, c_in, c_in), lambda c, i: (c, 0, 0)),
            pl.BlockSpec((None, c_in, 1), lambda c, i: (c, 0, 0)),
        ),
        compiler_params=pltpu.CompilerParams(
            dimension_semantics=("parallel", "arbitrary"),
            vmem_limit_bytes=_VMEM_LIMIT),
    )(x_flat)

    # ---- Tiny one-shot finalize in plain JAX (O(c_in*128*128), negligible).
    # gram = W S W^T + (W s) b^T + b (W s)^T + HW b b^T   (HW = real columns).
    s_mat = jnp.sum(s_parts, axis=0)                 # (c_in, c_in)
    s_vec = jnp.sum(v_parts, axis=0)                 # (c_in, 1)
    b_col = b.reshape(C_FEAT, 1)
    ws = w @ s_vec                                   # (128, 1)
    gram = (w @ s_mat @ w.T
            + ws @ b_col.T + b_col @ ws.T
            + float(hw) * (b_col @ b_col.T))         # (128, 128)
    diff = gram - tgt_gram
    # mse(gram, target) / normalize  (unsqueeze(0) does not change the mean).
    return jnp.sum(diff * diff) / (float(C_FEAT * C_FEAT) * float(normalize))


if __name__ == "__main__":
    key = jax.random.PRNGKey(0)
    k1, k2, k3, k4 = jax.random.split(key, 4)

    # gram_matrix's view(128, -1) implies batch=1, 128-channel style features.
    B, C_in = 1, 4

    # Deterministic synthetic "style_model" parameters (1x1 conv C_in -> 128).
    # TODO(synk): the original module wraps an arbitrary external style_model;
    # it is approximated here by this fixed linear 1x1 conv.
    w_conv = jax.random.normal(k1, (C_FEAT, C_in), jnp.float32) * 0.1
    b_conv = jax.random.normal(k2, (C_FEAT, 1), jnp.float32) * 0.1

    def model_ref(img):
        c, h, w_ = img.shape[1:]
        flat = img.reshape(c, h * w_)        # NCHW, B=1 -> (C_in, H*W)
        return w_conv @ flat + b_conv        # (128, H*W)

    # Second case has H*W not a multiple of the tile -> exercises the
    # zero-padded tail (the previously untested partial-tile path).
    for (H, W) in [(16, 16), (16, 15)]:
        HW = H * W
        style_img = jax.random.normal(jax.random.fold_in(k3, HW),
                                      (B, C_in, H, W), jnp.float32)
        x = jax.random.normal(jax.random.fold_in(k4, HW),
                              (B, C_in, H, W), jnp.float32)

        # ---- __init__ equivalent (plain JAX): target gram + normalize const.
        style_feats = model_ref(style_img)
        normalize = style_feats.size         # = 128 * H * W
        tgt_gram = style_feats @ style_feats.T

        # ---- forward via the Pallas kernel.
        x_flat = x.reshape(C_in, HW)
        loss = style_loss(x_flat, w_conv, b_conv, tgt_gram, normalize)
        loss = jax.block_until_ready(loss)

        # ---- numerical sanity check against the plain-JAX forward.
        feats = model_ref(x)
        gram = feats @ feats.T
        ref = float(jnp.mean((gram - tgt_gram) ** 2) / normalize)
        got = float(loss)
        assert bool(jnp.isfinite(loss)), "non-finite loss"
        assert abs(got - ref) <= 2e-2 * abs(ref) + 1e-6, (H, W, got, ref)

    print("KERNEL_OK")
</pallas_src>

<mosaic_0001>
module attributes {stable_mosaic.version = 11 : i64} {
  func.func @_stats_kernel(%arg0: i32, %arg1: i32, %arg2: memref<4x128xf32, #tpu.memory_space<vmem>>, %arg3: memref<1x4x4xf32, #tpu.memory_space<vmem>>, %arg4: memref<1x4x1xf32, #tpu.memory_space<vmem>>) attributes {dimension_semantics = [#tpu.dimension_semantics<parallel>, #tpu.dimension_semantics<arbitrary>], iteration_bounds = array<i64: 2, 1>, scalar_prefetch = 0 : i64, scratch_operands = 0 : i64, tpu.core_type = #tpu.core_type<tc>, window_params = [{transform_indices = @transform_0, window_bounds = array<i64: 4, 128>}, {transform_indices = @transform_1, window_bounds = array<i64: 1, 4, 4>}, {transform_indices = @transform_2, window_bounds = array<i64: 1, 4, 1>}]} {
    %c0_i32 = arith.constant 0 : i32
    %0 = arith.cmpi eq, %arg1, %c0_i32 : i32
    %1 = arith.extui %0 : i1 to i32
    %c0_i32_0 = arith.constant 0 : i32
    %2 = arith.cmpi ne, %1, %c0_i32_0 : i32
    scf.if %2 {
      %cst_15 = arith.constant 0.000000e+00 : f32
      %19 = vector.broadcast %cst_15 : f32 to vector<4x4xf32>
      %c0_16 = arith.constant 0 : index
      %c0_17 = arith.constant 0 : index
      %c0_18 = arith.constant 0 : index
      %20 = vector.load %arg3[%c0_16, %c0_17, %c0_18] : memref<1x4x4xf32, #tpu.memory_space<vmem>>, vector<1x4x4xf32>
      %21 = vector.shape_cast %20 : vector<1x4x4xf32> to vector<4x4xf32>
      %22 = vector.shape_cast %19 : vector<4x4xf32> to vector<1x4x4xf32>
      tpu.vector_store %arg3[%c0_16, %c0_17, %c0_18], %22 {strides = array<i32>} : memref<1x4x4xf32, #tpu.memory_space<vmem>>, vector<1x4x4xf32>,
      %cst_19 = arith.constant 0.000000e+00 : f32
      %23 = vector.broadcast %cst_19 : f32 to vector<4x1xf32>
      %c0_20 = arith.constant 0 : index
      %c0_21 = arith.constant 0 : index
      %c0_22 = arith.constant 0 : index
      %24 = vector.load %arg4[%c0_20, %c0_21, %c0_22] : memref<1x4x1xf32, #tpu.memory_space<vmem>>, vector<1x4x1xf32>
      %25 = vector.shape_cast %24 : vector<1x4x1xf32> to vector<4x1xf32>
      %26 = vector.shape_cast %23 : vector<4x1xf32> to vector<1x4x1xf32>
      tpu.vector_store %arg4[%c0_20, %c0_21, %c0_22], %26 {strides = array<i32>} : memref<1x4x1xf32, #tpu.memory_space<vmem>>, vector<1x4x1xf32>,
    } else {
    }
    %c0 = arith.constant 0 : index
    %c0_1 = arith.constant 0 : index
    %3 = vector.load %arg2[%c0, %c0_1] : memref<4x128xf32, #tpu.memory_space<vmem>>, vector<4x128xf32>
    %c0_2 = arith.constant 0 : index
    %c0_3 = arith.constant 0 : index
    %c0_4 = arith.constant 0 : index
    %4 = vector.load %arg3[%c0_2, %c0_3, %c0_4] : memref<1x4x4xf32, #tpu.memory_space<vmem>>, vector<1x4x4xf32>
    %5 = vector.shape_cast %4 : vector<1x4x4xf32> to vector<4x4xf32>
    %cst = arith.constant dense<0.000000e+00> : vector<4x4xf32>
    %6 = tpu.matmul %3, %3, %cst {dimension_numbers = #tpu.dot_dimension_numbers<[1], [1], [0], [0], [0, 0, 1, 0], [], []>} : vector<4x128xf32>, vector<4x128xf32>, vector<4x4xf32> -> vector<4x4xf32>
    %7 = arith.addf %5, %6 : vector<4x4xf32>
    %c0_5 = arith.constant 0 : index
    %c0_6 = arith.constant 0 : index
    %c0_7 = arith.constant 0 : index
    %8 = vector.load %arg3[%c0_5, %c0_6, %c0_7] : memref<1x4x4xf32, #tpu.memory_space<vmem>>, vector<1x4x4xf32>
    %9 = vector.shape_cast %8 : vector<1x4x4xf32> to vector<4x4xf32>
    %10 = vector.shape_cast %7 : vector<4x4xf32> to vector<1x4x4xf32>
    tpu.vector_store %arg3[%c0_5, %c0_6, %c0_7], %10 {strides = array<i32>} : memref<1x4x4xf32, #tpu.memory_space<vmem>>, vector<1x4x4xf32>,
    %c0_8 = arith.constant 0 : index
    %c0_9 = arith.constant 0 : index
    %c0_10 = arith.constant 0 : index
    %11 = vector.load %arg4[%c0_8, %c0_9, %c0_10] : memref<1x4x1xf32, #tpu.memory_space<vmem>>, vector<1x4x1xf32>
    %12 = vector.shape_cast %11 : vector<1x4x1xf32> to vector<4x1xf32>
    %cst_11 = arith.constant dense<0.000000e+00> : vector<4xf32>
    %13 = vector.multi_reduction <add>, %3, %cst_11 [1] : vector<4x128xf32> to vector<4xf32>
    %14 = vector.shape_cast %13 : vector<4xf32> to vector<4x1xf32>
    %15 = arith.addf %12, %14 : vector<4x1xf32>
    %c0_12 = arith.constant 0 : index
    %c0_13 = arith.constant 0 : index
    %c0_14 = arith.constant 0 : index
    %16 = vector.load %arg4[%c0_12, %c0_13, %c0_14] : memref<1x4x1xf32, #tpu.memory_space<vmem>>, vector<1x4x1xf32>
    %17 = vector.shape_cast %16 : vector<1x4x1xf32> to vector<4x1xf32>
    %18 = vector.shape_cast %15 : vector<4x1xf32> to vector<1x4x1xf32>
    tpu.vector_store %arg4[%c0_12, %c0_13, %c0_14], %18 {strides = array<i32>} : memref<1x4x1xf32, #tpu.memory_space<vmem>>, vector<1x4x1xf32>,
    return
  }
  func.func @transform_0(%arg0: i32, %arg1: i32) -> (i32, i32) {
    %c1_i32 = arith.constant 1 : i32
    %0 = arith.muli %arg0, %c1_i32 : i32
    %1 = arith.addi %0, %arg1 : i32
    %c0_i32 = arith.constant 0 : i32
    %c0_i32_0 = arith.constant 0 : i32
    return %c0_i32, %1 : i32, i32
  }
  func.func @transform_1(%arg0: i32, %arg1: i32) -> (i32, i32, i32) {
    %c0_i32 = arith.constant 0 : i32
    %c0_i32_0 = arith.constant 0 : i32
    %c0_i32_1 = arith.constant 0 : i32
    return %arg0, %c0_i32, %c0_i32_0 : i32, i32, i32
  }
  func.func @transform_2(%arg0: i32, %arg1: i32) -> (i32, i32, i32) {
    %c0_i32 = arith.constant 0 : i32
    %c0_i32_0 = arith.constant 0 : i32
    %c0_i32_1 = arith.constant 0 : i32
    return %arg0, %c0_i32, %c0_i32_0 : i32, i32, i32
  }
}

</mosaic_0001>

<llo_original>
// kernel: tpu_custom_call.1
$region0: #{tpu_custom_call.1}
  #allocation0 [shape = 'u32[]', space=smem, size = 0x4, offset = 0x4, fixed_abs, tag = 'smem constant byte address 0x4 - core index']
  #allocation1 [shape = 'u32[72,128]{1,0:T(1,128)}', space=vmem, size = 0x9000, scoped, tag = 'internal scratch']
  %s0 = inlined_call_operand.hbm [shape: f32[4,256], index: 0, kind: input, shape index: {}]
  %s1 = inlined_call_operand.hbm [shape: f32[2,4,4], index: 1, kind: output, shape index: {0}]
  %s2 = inlined_call_operand.vmem [shape: f32[2,4,1], index: 2, kind: output, shape index: {1}]
  %3 = xla_tuple %s1, %s2
  %s4 = sld [smem:[#allocation0]]
  $region53: #{tpu_custom_call.1} parent=0
    _
  %s6 = ssub.s32 1, %s4
  %s7 = scalar_select 0, %s6, %s4
  $region1: #{tpu_custom_call.1} parent=0
    #allocation2 [shape = 'u8[4096]{0}', space=vmem, size = 0x1000, scoped, tag = 'input window, operand 0']
    #allocation3 [shape = 's32[2]{0}', space=sflag, size = 0x8, scoped, tag = 'scoped memory for tpu_custom_call.1']
    #allocation4 [shape = 's32[2]{0}', space=sflag, size = 0x8, scoped, tag = 'scoped memory for tpu_custom_call.1']
    #allocation5 [shape = 'u8[4096]{0}', space=vmem, size = 0x1000, scoped, tag = 'output window, operand 0']
    %8 = vsyncpa [#allocation3], 0
    %s9 = scalar_lea.sflag [#allocation3], 1
    %10 = vsyncpa %s9, 0
    %11 = vsyncpa [#allocation4], 0
    %s12 = scalar_lea.sflag [#allocation4], 1
    %13 = vsyncpa %s12, 0
    loop: start=0, step=1, limit=4
    $region2: #{tpu_custom_call.1} parent=1 // loop_pre_header
      _
    $region3: #{tpu_custom_call.1} parent=1 // loop_header
      %s15 = sphi 0, %s19
      %p16 = scmp.ge.s32.totalorder %s15, 4
      %s22 = sphi 0, %s34
      %s23 = sphi 0, %s30
      %s24 = sphi 0, %s22
      %s25 = sphi 0, %s23
      %s26 = sphi 0, %s24
      %s27 = sphi 0, %s25
      %s39 = sphi 0, %s41
      %s42 = sphi 0, %s39
      %s43 = sphi 0, %s42
      %s59 = sphi 0, %s43
      %s65 = sphi 0, %s67
      %s68 = sphi 0, %s65
      %s69 = sphi 0, %s68
      %s85 = sphi 0, %s69
      %s91 = sphi 0, %s93
      %s94 = sphi 0, %s91
      %s95 = sphi 0, %s94
      %s111 = sphi 0, %s95
    $region4: #{tpu_custom_call.1} parent=1 // loop_header_branch
      %18 = sbr.rel (%p16) target = $region8
    $region5: #{tpu_custom_call.1} parent=1 // loop_body
      %s20 = ssub.s32 %s15, 1
      %s21 = ssub.s32 %s15, 2
      %s28 = sadd.s32 1, %s23
      %p29 = scmp.ge.s32.totalorder %s28, 1
      %s30 = scalar_select %p29, 0, %s28
      %s31 = sadd.s32 1, %s22
      %s32 = scalar_select %p29, %s31, %s22
      %p33 = scmp.ge.s32.totalorder %s32, 2
      %s34 = scalar_select %p33, 0, %s32
      %s35 = sadd.s32 %s22, %s23
      %s36 = sadd.s32 %s34, %s30
      %s37 = ssub.s32 %s35, %s36
      %p38 = scmp.eq.s32.totalorder %s37, 0
      %s40 = sadd.s32 %s39, 1
      %s41 = scalar_select %p38, %s39, %s40
      %p44 = pneg %p38
      %p45 = scmp.eq.s32.totalorder %s15, 1
      %p46 = por %p44, %p45
      %p47 = scmp.ne.s32.totalorder %s39, %s42
      %p48 = scmp.eq.s32.totalorder %s15, 0
      %p49 = por %p47, %p48
      %p50 = scmp.ne.s32.totalorder %s39, %s42
      %p51 = scmp.eq.s32.totalorder %s20, 1
      %p52 = por %p50, %p51
      %p53 = scmp.ne.s32.totalorder %s42, %s43
      %p54 = scmp.eq.s32.totalorder %s20, 0
      %p55 = por %p53, %p54
      %p56 = scmp.ne.s32.totalorder %s42, %s43
      %p57 = scmp.eq.s32.totalorder %s21, 1
      %p58 = por %p56, %p57
      %p60 = scmp.ne.s32.totalorder %s43, %s59
      %p61 = scmp.eq.s32.totalorder %s21, 0
      %p62 = por %p60, %p61
      %s63 = ssub.s32 %s22, %s34
      %p64 = scmp.eq.s32.totalorder %s63, 0
      %s66 = sadd.s32 %s65, 1
      %s67 = scalar_select %p64, %s65, %s66
      %p70 = pneg %p64
      %p71 = scmp.eq.s32.totalorder %s15, 1
      %p72 = por %p70, %p71
      %p73 = scmp.ne.s32.totalorder %s65, %s68
      %p74 = scmp.eq.s32.totalorder %s15, 0
      %p75 = por %p73, %p74
      %p76 = scmp.ne.s32.totalorder %s65, %s68
      %p77 = scmp.eq.s32.totalorder %s20, 1
      %p78 = por %p76, %p77
      %p79 = scmp.ne.s32.totalorder %s68, %s69
      %p80 = scmp.eq.s32.totalorder %s20, 0
      %p81 = por %p79, %p80
      %p82 = scmp.ne.s32.totalorder %s68, %s69
      %p83 = scmp.eq.s32.totalorder %s21, 1
      %p84 = por %p82, %p83
      %p86 = scmp.ne.s32.totalorder %s69, %s85
      %p87 = scmp.eq.s32.totalorder %s21, 0
      %p88 = por %p86, %p87
      %s89 = ssub.s32 %s22, %s34
      %p90 = scmp.eq.s32.totalorder %s89, 0
      %s92 = sadd.s32 %s91, 1
      %s93 = scalar_select %p90, %s91, %s92
      %p96 = pneg %p90
      %p97 = scmp.eq.s32.totalorder %s15, 1
      %p98 = por %p96, %p97
      %p99 = scmp.ne.s32.totalorder %s91, %s94
      %p100 = scmp.eq.s32.totalorder %s15, 0
      %p101 = por %p99, %p100
      %p102 = scmp.ne.s32.totalorder %s91, %s94
      %p103 = scmp.eq.s32.totalorder %s20, 1
      %p104 = por %p102, %p103
      %p105 = scmp.ne.s32.totalorder %s94, %s95
      %p106 = scmp.eq.s32.totalorder %s20, 0
      %p107 = por %p105, %p106
      %p108 = scmp.ne.s32.totalorder %s94, %s95
      %p109 = scmp.eq.s32.totalorder %s21, 1
      %p110 = por %p108, %p109
      %p112 = scmp.ne.s32.totalorder %s95, %s111
      %p113 = scmp.eq.s32.totalorder %s21, 0
      %p114 = por %p112, %p113
      %p115 = scmp.le.s32.totalorder 1, %s15
      %p116 = scmp.lt.s32.totalorder %s15, 3
      %p117 = pnand %p115, %p116
      %p118 = pneg %p117
      // Predicated region
      $region9: #{tpu_custom_call.1} parent=5 // pred_check
        _
      $region10: #{tpu_custom_call.1} parent=5 // pred_check_branch
        %120 = sbr.rel (%p117) target = $region12
      $region11: #{tpu_custom_call.1} parent=5 // pred_region
        %s121 = ssub.s32 %s15, 1
      $region12: #{tpu_custom_call.1} parent=5 // pred_fallthru
        _
      %p122 = scmp.lt.s32.totalorder %s15, 2
      // Predicated region
      $region13: #{tpu_custom_call.1} parent=5 // pred_check
        %p123 = pneg %p122
      $region14: #{tpu_custom_call.1} parent=5 // pred_check_branch
        %125 = sbr.rel (%p123) target = $region16
      $region15: #{tpu_custom_call.1} parent=5 // pred_region
        // Predicated region
        $region17: #{tpu_custom_call.1} parent=15 // pred_check
          %p126 = pneg %p49
        $region18: #{tpu_custom_call.1} parent=15 // pred_check_branch
          %128 = sbr.rel (%p126) target = $region20
        $region19: #{tpu_custom_call.1} parent=15 // pred_region
          %s129 = sand.u32 %s39, 1
          %s130 = scalar_lea.sflag [#allocation3], %s129
          %s131 = sand.u32 %s39, 1
          %s132 = smul.addr %s131, 4
          %s133 = scalar_lea.vmem [#allocation2], %s132
          %s134 = sadd.s32 %s22, %s23
          %136 = vsyncadd %s130, 0
          %s137 = smul.addr %s134, 4
          %s138 = scalar_lea.hbm %s0, %s137
          %s140 = sshll.u32 %s138, 4
          %s141 = int_to_ptr.hbm [resolvable:$true] %s140
          %s142 = sshll.u32 %s133, 4
          %s143 = int_to_ptr.vmem [resolvable:$true] %s142
          %145 = dma.hbm_to_vmem [thread:$0]  %s141, 64, %s143, %s130
        $region20: #{tpu_custom_call.1} parent=15 // pred_fallthru
          _
      $region16: #{tpu_custom_call.1} parent=5 // pred_fallthru
        _
      %p146 = scmp.le.s32.totalorder 1, %s15
      %p147 = scmp.lt.s32.totalorder %s15, 3
      %p148 = pnand %p146, %p147
      %p149 = pneg %p148
      // Predicated region
      $region21: #{tpu_custom_call.1} parent=5 // pred_check
        _
      $region22: #{tpu_custom_call.1} parent=5 // pred_check_branch
        %151 = sbr.rel (%p148) target = $region24
      $region23: #{tpu_custom_call.1} parent=5 // pred_region
        %s152 = ssub.s32 %s15, 1
        %s153 = sand.u32 %s42, 1
        %s154 = scalar_lea.sflag [#allocation3], %s153
        %s155 = sand.u32 %s42, 1
        %s156 = smul.addr %s155, 4
        %s157 = scalar_lea.vmem [#allocation2], %s156
        // Predicated region
        $region25: #{tpu_custom_call.1} parent=23 // pred_check
          %p158 = pneg %p55
        $region26: #{tpu_custom_call.1} parent=23 // pred_check_branch
          %160 = sbr.rel (%p158) target = $region28
        $region27: #{tpu_custom_call.1} parent=23 // pred_region
          %162 = dma.done %s154, 64
        $region28: #{tpu_custom_call.1} parent=23 // pred_fallthru
          _
        %s163 = sand.u32 %s42, 1
        %s164 = scalar_lea.sflag [#allocation3], %s163
        %s165 = sand.u32 %s42, 1
        %s166 = smul.addr %s165, 4
        %s167 = scalar_lea.vmem [#allocation2], %s166
        %p168 = pneg %p55
        %p169 = pneg %p52
        %p170 = pneg %p81
        %p171 = pneg %p78
        %s172 = sand.u32 %s68, 1
        %s173 = scalar_lea.sflag [#allocation4], %s172
        %s174 = sand.u32 %s68, 1
        %s175 = smul.addr %s174, 4
        %s176 = scalar_lea.vmem [#allocation5], %s175
        %p177 = pneg %p107
        %p178 = pneg %p104
        %p179 = scmp.lt.s32.totalorder %s24, 1
        %s180 = scalar_select %p179, %s24, 1
        %s181 = smul.addr %s180, 4
        %s182 = scalar_lea.vmem %s2, %s181
        %s183 = sadd.s32 %s24, %s25
        %p184 = scmp.lt.s32.totalorder %s24, 1
        %s185 = scalar_select %p184, %s24, 1
        %s186 = smul.addr %s185, 4
        %s187 = scalar_lea.vmem %s2, %s186
        %p188 = scmp.eq.s32.totalorder %s25, 0
        // Predicated region
        $region29: #{tpu_custom_call.1} parent=23 // pred_check
          %p189 = pneg %p188
        $region30: #{tpu_custom_call.1} parent=23 // pred_check_branch
          %191 = sbr.rel (%p189) target = $region32
        $region31: #{tpu_custom_call.1} parent=23 // pred_region
          %vm192 = vcmask 27648
          %193 = vst.msk [vmem:[%s176] sm:$0xf] %vm192, 0.0
          %vm194 = vcmask 3072
          %195 = vst.msk [vmem:[%s187] sm:$0xf] %vm194, 0.0
        $region32: #{tpu_custom_call.1} parent=23 // pred_fallthru
          _
        %v196 = vld [vmem:[%s157] sm:$0xf]
        %v197 = vld [vmem:[%s176] sm:$0xf]
        %198 = vmatpush.xpose.msra.mxu0 0.0
        %199 = vmatpush.xpose.msra.mxu0 0.0
        %200 = vmatpush.xpose.msra.mxu0 0.0
        %201 = vmatpush.xpose.msra.mxu0 0.0
        %202 = vmatpush.xpose.msra.mxu0 0.0
        %203 = vmatpush.xpose.msra.mxu0 0.0
        %204 = vmatpush.xpose.msra.mxu0 0.0
        %205 = vmatpush.xpose.msra.mxu0 0.0
        %206 = vmatpush.xpose.msra.mxu0 0.0
        %207 = vmatpush.xpose.msra.mxu0 0.0
        %208 = vmatpush.xpose.msra.mxu0 0.0
        %209 = vmatpush.xpose.msra.mxu0 0.0
        %210 = vmatpush.xpose.msra.mxu0 0.0
        %211 = vmatpush.xpose.msra.mxu0 0.0
        %212 = vmatpush.xpose.msra.mxu0 0.0
        %213 = vmatpush.xpose.msra.mxu0 %v196
        %214 = vmatmul.f32.gmra.mxu0 %v196
        %v215 = vpop.f32.mrf.mxu0
        %v216 = vadd.f32 0.0, %v215
        %217 = vdwg.mxu0
        %v218 = vadd.f32 %v197, %v216
        %vm219 = vcmask 27648
        %220 = vst.msk [vmem:[%s176] sm:$0xf] %vm219, %v218
        %v221 = vld [vmem:[%s187] sm:$0xf]
        %vm222 = vcmask 1043456
        %v223 = vsel %vm222, %v196, 0.0
        %224 = vadd.xlane.f32.xlu0 %v223
        %v225 = vpop.xlane.xlu0 %224
        %v226 = vadd.f32 %v221, %v225
        %vm227 = vcmask 3072
        %228 = vst.msk [vmem:[%s187] sm:$0xf] %vm227, %v226
        %s229 = sand.u32 %s68, 1
        %s230 = scalar_lea.sflag [#allocation4], %s229
        %s231 = sand.u32 %s68, 1
        %s232 = smul.addr %s231, 4
        %s233 = scalar_lea.vmem [#allocation5], %s232
        %p234 = scmp.lt.s32.totalorder %s24, 1
        %s235 = scalar_select %p234, %s24, 1
        %s236 = smul.addr %s235, 4
        %s237 = scalar_lea.vmem %s2, %s236
        // Predicated region
        $region33: #{tpu_custom_call.1} parent=23 // pred_check
          %p238 = pneg %p78
        $region34: #{tpu_custom_call.1} parent=23 // pred_check_branch
          %240 = sbr.rel (%p238) target = $region36
        $region35: #{tpu_custom_call.1} parent=23 // pred_region
          %242 = vsyncadd %s230, 0
          %s243 = smul.addr %s24, 4
          %s244 = scalar_lea.hbm %s1, %s243
          %s246 = sshll.u32 %s233, 4
          %s247 = int_to_ptr.vmem [resolvable:$true] %s246
          %s248 = sshll.u32 %s244, 4
          %s249 = int_to_ptr.hbm [resolvable:$true] %s248
          %251 = dma.vmem_to_hbm [thread:$0]  %s247, 64, %s249, %s230
        $region36: #{tpu_custom_call.1} parent=23 // pred_fallthru
          _
        // Predicated region
        $region37: #{tpu_custom_call.1} parent=23 // pred_check
          %p252 = pneg %p104
        $region38: #{tpu_custom_call.1} parent=23 // pred_check_branch
          %254 = sbr.rel (%p252) target = $region40
        $region39: #{tpu_custom_call.1} parent=23 // pred_region
          _
        $region40: #{tpu_custom_call.1} parent=23 // pred_fallthru
          _
      $region24: #{tpu_custom_call.1} parent=5 // pred_fallthru
        _
      %p255 = scmp.le.s32.totalorder 2, %s15
      // Predicated region
      $region41: #{tpu_custom_call.1} parent=5 // pred_check
        %p256 = pneg %p255
      $region42: #{tpu_custom_call.1} parent=5 // pred_check_branch
        %258 = sbr.rel (%p256) target = $region44
      $region43: #{tpu_custom_call.1} parent=5 // pred_region
        %s259 = ssub.s32 %s15, 2
        // Predicated region
        $region45: #{tpu_custom_call.1} parent=43 // pred_check
          %p260 = pneg %p84
        $region46: #{tpu_custom_call.1} parent=43 // pred_check_branch
          %262 = sbr.rel (%p260) target = $region48
        $region47: #{tpu_custom_call.1} parent=43 // pred_region
          %s263 = sand.u32 %s69, 1
          %s264 = scalar_lea.sflag [#allocation4], %s263
          %s265 = sand.u32 %s69, 1
          %s266 = smul.addr %s265, 4
          %s267 = scalar_lea.vmem [#allocation5], %s266
          %269 = dma.done %s264, 64
        $region48: #{tpu_custom_call.1} parent=43 // pred_fallthru
          _
        // Predicated region
        $region49: #{tpu_custom_call.1} parent=43 // pred_check
          %p270 = pneg %p110
        $region50: #{tpu_custom_call.1} parent=43 // pred_check_branch
          %272 = sbr.rel (%p270) target = $region52
        $region51: #{tpu_custom_call.1} parent=43 // pred_region
          %p273 = scmp.lt.s32.totalorder %s26, 1
          %s274 = scalar_select %p273, %s26, 1
          %s275 = smul.addr %s274, 4
          %s276 = scalar_lea.vmem %s2, %s275
        $region52: #{tpu_custom_call.1} parent=43 // pred_fallthru
          _
      $region44: #{tpu_custom_call.1} parent=5 // pred_fallthru
        _
    $region6: #{tpu_custom_call.1} parent=1 // loop_footer
      %s19 = sadd.s32 1, %s15
    $region7: #{tpu_custom_call.1} parent=1 // loop_footer_branch
      %14 = sbr.rel target = $region3
    $region8: #{tpu_custom_call.1} parent=1 // loop_exit
      _
    %277 = vsyncpa [#allocation3], 1
    %s278 = scalar_lea.sflag [#allocation3], 1
    %279 = vsyncpa %s278, 1
    %280 = vsyncpa [#allocation4], 1
    %s281 = scalar_lea.sflag [#allocation4], 1
    %282 = vsyncpa %s281, 1

</llo_original>
